<compile_context>
chip_gen: v7x
topology: tpu7x:2x2x1
jax: 0.10.0
libtpu: 0.0.40
codegen_flags: <defaults>
</compile_context>

<pallas_src>
import numpy as np
import jax
import jax.numpy as jnp
from jax.experimental import pallas as pl
from jax.experimental.pallas import tpu as pltpu


# ----------------------------------------------------------------------------- kernels
def _sigmoid3_kernel(rel_ref, obj_ref, sub_ref, relp_ref, objd_ref, subd_ref):
    # Three EUP sigmoids on lane-dense 2D slabs, single grid step.
    relp_ref[...] = jax.nn.sigmoid(rel_ref[...])
    objd_ref[...] = jax.nn.sigmoid(obj_ref[...])
    subd_ref[...] = jax.nn.sigmoid(sub_ref[...])


def fused_sigmoid(rel_logits, obj_logits, sub_logits):
    """sigmoid(rel / obj / sub logits) in one lane-dense single-step launch."""
    B, Q, Cr = rel_logits.shape
    Ce = obj_logits.shape[-1]
    f32 = jnp.float32
    rel2 = rel_logits.reshape(B, Q * Cr).astype(f32)
    obj2 = obj_logits.reshape(B, Q * Ce).astype(f32)
    sub2 = sub_logits.reshape(B, Q * Ce).astype(f32)

    def spec(n):
        return pl.BlockSpec((B, n), lambda i: (0, 0))

    relp, objd, subd = pl.pallas_call(
        _sigmoid3_kernel,
        out_shape=(jax.ShapeDtypeStruct((B, Q * Cr), f32),
                   jax.ShapeDtypeStruct((B, Q * Ce), f32),
                   jax.ShapeDtypeStruct((B, Q * Ce), f32)),
        grid=(1,),
        in_specs=[spec(Q * Cr), spec(Q * Ce), spec(Q * Ce)],
        out_specs=(spec(Q * Cr), spec(Q * Ce), spec(Q * Ce)),
        compiler_params=pltpu.CompilerParams(dimension_semantics=("arbitrary",)),
    )(rel2, obj2, sub2)
    return (relp.reshape(B, Q, Cr), objd.reshape(B, Q, Ce), subd.reshape(B, Q, Ce))


def _giou_kernel(q_ref, k_ref, o_ref):
    # NOTE: reproduces the reference semantics exactly: ent_box is already xyxy
    # but generalized_box_iou is fed box_cxcywh_to_xyxy(ent_box) again; the
    # resulting "boxes" have w = x2 > 0, h = y2 > 0, so union/earea > 0 and the
    # approximate (EUP) reciprocal is safe (host use is 0.8 / 0.95 thresholds).
    q = q_ref[0]          # (TN, 4)  query boxes: sublanes=boxes, lanes=coords
    k = k_ref[0]          # (4, TC)  key boxes:   sublanes=coords, lanes=boxes

    qx1 = q[:, 0:1] - 0.5 * q[:, 2:3]
    qy1 = q[:, 1:2] - 0.5 * q[:, 3:4]
    qx2 = q[:, 0:1] + 0.5 * q[:, 2:3]
    qy2 = q[:, 1:2] + 0.5 * q[:, 3:4]

    kx1 = k[0:1, :] - 0.5 * k[2:3, :]
    ky1 = k[1:2, :] - 0.5 * k[3:4, :]
    kx2 = k[0:1, :] + 0.5 * k[2:3, :]
    ky2 = k[1:2, :] + 0.5 * k[3:4, :]

    area_q = (qx2 - qx1) * (qy2 - qy1)          # (TN, 1)
    area_k = (kx2 - kx1) * (ky2 - ky1)          # (1, TC)

    iw = jnp.maximum(jnp.minimum(qx2, kx2) - jnp.maximum(qx1, kx1), 0.0)
    ih = jnp.maximum(jnp.minimum(qy2, ky2) - jnp.maximum(qy1, ky1), 0.0)
    inter = iw * ih                             # (TN, TC)
    union = area_q + area_k - inter
    iou = inter * pl.reciprocal(union, approx=True)        # divide -> EUP

    ew = jnp.maximum(jnp.maximum(qx2, kx2) - jnp.minimum(qx1, kx1), 0.0)
    eh = jnp.maximum(jnp.maximum(qy2, ky2) - jnp.minimum(qy1, ky1), 0.0)
    earea = ew * eh
    giou = iou - (earea - union) * pl.reciprocal(earea, approx=True)
    o_ref[0] = giou.astype(o_ref.dtype)         # bf16 store: half the writeback


def generalized_box_iou_pallas(boxes):
    """Batched pairwise GIoU on the UNIQUE boxes.

    boxes: (B, N, 4) scaled xyxy.  Returns the lane-dense PADDED (B, NP, NP)
    bfloat16 matrix plus N; the caller slices [:N, :N] on the host AFTER
    device_get (free numpy view, no device-side crop).
    """
    B, N, _ = boxes.shape
    NP = ((N + 127) // 128) * 128               # lane-dense rows/columns
    boxes = boxes.astype(jnp.float32)
    if NP != N:
        # Harmless non-degenerate dummy box for the padded region.
        pad = jnp.broadcast_to(jnp.array([0.0, 0.0, 1.0, 1.0], jnp.float32),
                               (B, NP - N, 4))
        boxes = jnp.concatenate([boxes, pad], axis=1)
    boxes_t = jnp.transpose(boxes, (0, 2, 1))   # (B, 4, NP) key layout (tiny copy)

    # Column tile (key width) and row tile, budgeted so the double-buffered
    # bf16 output tile stays <= 8 MiB (safe on v7x's 64 MiB physical VMEM).
    TC = NP if NP <= 2048 else max(t for t in (2048, 1024, 512, 256, 128) if NP % t == 0)
    TN = max(t for t in (1024, 512, 256, 128)
             if NP % t == 0 and t * TC * 2 * 2 <= 8 * 1024 * 1024)

    grid = (B, NP // TC, NP // TN)              # B outer, key cols, query rows inner
    out = pl.pallas_call(
        _giou_kernel,
        out_shape=jax.ShapeDtypeStruct((B, NP, NP), jnp.bfloat16),
        grid=grid,
        in_specs=[pl.BlockSpec((1, TN, 4), lambda b, j, i: (b, i, 0)),
                  pl.BlockSpec((1, 4, TC), lambda b, j, i: (b, 0, j))],
        out_specs=pl.BlockSpec((1, TN, TC), lambda b, j, i: (b, i, j)),
        compiler_params=pltpu.CompilerParams(
            dimension_semantics=("parallel", "parallel", "parallel"),
            vmem_limit_bytes=32 * 1024 * 1024),   # raises v5e's 16 MiB scoped default
    )(boxes, boxes_t)
    return out, N


# ----------------------------------------------------------------------------- helpers
def box_cxcywh_to_xyxy_scaled(box, scale_fct):
    """cxcywh (B,Q,4) -> scaled xyxy; 8 tiny VPU ops, plain XLA (perf review)."""
    c = box[..., 0:2]
    half = 0.5 * box[..., 2:4]
    xyxy = jnp.concatenate([c - half, c + half], axis=-1)
    return xyxy * scale_fct[:, None, :]


# ----------------------------------------------------------------------------- module
class RelPostProcessSingleBranch:
    SUB_IDX, OBJ_IDX, REL_LABEL, REL_TRP_SCR, REL_PRED_SCR, INIT_PROP_IDX = range(6)

    def __init__(self, overlap_thres=0.8, num_ent_class=16, num_pred_edges=1,
                 num_entities_pairing=2, num_max_rel_pred=100,
                 focal_loss=True, use_entities_pred=True):
        # cfg.MODEL.REL_DETR.* constants, initialized deterministically in-script.
        self.overlap_thres = overlap_thres
        self.num_ent_class = num_ent_class
        self.num_pred_edges = num_pred_edges
        self.num_entities_pairing = num_entities_pairing
        self.num_max_rel_pred = num_max_rel_pred
        self.focal_loss = focal_loss
        self.use_entities_pred = use_entities_pred

    # --- host-side greedy relation de-duplication (sequential, data-dependent)
    # TODO(synk): dynamic-shape greedy NMS-style filtering has no clean Pallas
    # equivalent; kept on host (numpy) with identical semantics.
    def _rel_prediction_filtering(self, trip, iou_u, idx_map, ent_label, ent_score):
        sub_idx = trip[:, self.SUB_IDX].astype(np.int64)
        obj_idx = trip[:, self.OBJ_IDX].astype(np.int64)
        sub_u = idx_map[sub_idx]       # ent index -> unique-box (GIoU) index
        obj_u = idx_map[obj_idx]
        rel_pred_label = trip[:, self.REL_LABEL].astype(np.int64)
        rel_pred_score = trip[:, self.REL_TRP_SCR]
        pred_idx_set = []
        for i in range(len(trip)):
            nsi, noi = sub_idx[i], obj_idx[i]
            nsl, nol = ent_label[nsi], ent_label[noi]
            npl = rel_pred_label[i]
            nps = rel_pred_score[i] * ent_score[nsi] * ent_score[noi]
            pidx = np.asarray(pred_idx_set, dtype=np.int64)
            csi, coi = sub_idx[pidx], obj_idx[pidx]
            csl, col = ent_label[csi], ent_label[coi]
            cpl = rel_pred_label[pidx]
            cps = rel_pred_score[pidx] * ent_score[csi] * ent_score[coi]
            ent_idx_match = (csi == nsi) & (coi == noi)
            sub_iou = iou_u[np.full(len(pidx), sub_u[i]), sub_u[pidx]]
            obj_iou = iou_u[np.full(len(pidx), obj_u[i]), obj_u[pidx]]
            ent_pred_match = ((sub_iou > self.overlap_thres) & (obj_iou > self.overlap_thres)
                              & (csl == nsl) & (col == nol))
            entity_match = ent_pred_match | ent_idx_match
            if entity_match.any():
                rel_match = entity_match & (cpl == npl)
                if rel_match.any():
                    if not (nps < cps[rel_match]).any():
                        pred_idx_set.append(i)
                else:
                    pred_idx_set.append(i)
            else:
                pred_idx_set.append(i)
        mask = np.zeros(len(trip), dtype=bool)
        mask[np.asarray(pred_idx_set, dtype=np.int64)] = True
        return trip[mask]

    def _res2dict(self, trip, aux):
        init_idx = trip[:, self.INIT_PROP_IDX].astype(np.int64)
        ret = {
            'rel_trp': trip[:, :3].astype(np.int64),
            'rel_pred_label': trip[:, self.REL_LABEL].astype(np.int64),
            'rel_score': trip[:, self.REL_PRED_SCR],
            'rel_trp_score': trip[:, self.REL_TRP_SCR],
            'pred_prob_dist': aux['pred_rel_probs_b'][init_idx],
            'init_prop_indx': init_idx,
            # kept on device (per-image slices of the batched device arrays)
            'rel_branch_score': aux['ent_score_dev'],
            'rel_branch_label': aux['ent_label_dev'].astype(jnp.int32),
            'rel_branch_dist': aux['ent_dist_dev'],
        }
        if self.use_entities_pred:
            ret['rel_branch_box'] = aux['ent_box_dev']
        # (obj/sub naming crossed over exactly as in the reference module)
        ret.update({
            'pred_rel_ent_obj_box': aux['obj_box'][init_idx],
            'pred_rel_ent_sub_box': aux['sub_box'][init_idx],
            'pred_rel_ent_obj_label': aux['sub_label_flat'][init_idx],
            'pred_rel_ent_sub_label': aux['obj_label_flat'][init_idx],
            'pred_rel_ent_obj_score': aux['sub_score_flat'][init_idx],
            'pred_rel_ent_sub_score': aux['obj_score_flat'][init_idx],
            'pred_rel_ent_obj_dist': aux['obj_dist'][init_idx],
            'pred_rel_ent_sub_dist': aux['sub_dist'][init_idx],
        })
        return ret

    def forward(self, outputs, det_res, target_sizes, max_proposal_pairs=300,
                post_proc_filtering=True):
        pred_rel_logits = outputs['pred_rel_logits']        # (B, Q, Cr)
        B, Q, Cr = pred_rel_logits.shape
        assert self.focal_loss, "only the focal-loss (sigmoid) branch is implemented"
        assert self.num_ent_class == outputs['pred_rel_obj_logits'].shape[-1]

        img_h, img_w = target_sizes[:, 0], target_sizes[:, 1]
        scale_fct = jnp.stack([img_w, img_h, img_w, img_h], axis=1)   # (B, 4)
        # NOTE: the reference scales pred_rel_vec but never uses the result in
        # this branch, so that dead work is dropped.

        # ---- Pallas: three sigmoids, one lane-dense single-step launch
        rel_probs, obj_dist, sub_dist = fused_sigmoid(
            pred_rel_logits,
            outputs['pred_rel_obj_logits'], outputs['pred_rel_sub_logits'])

        # ---- box conversion + scaling in plain jnp (tiny; XLA fuses it)
        obj_box_xyxy = box_cxcywh_to_xyxy_scaled(outputs['pred_rel_obj_box'].astype(jnp.float32), scale_fct)
        sub_box_xyxy = box_cxcywh_to_xyxy_scaled(outputs['pred_rel_sub_box'].astype(jnp.float32), scale_fct)

        pne, mme = self.num_pred_edges, self.num_entities_pairing
        topk = Q * pne
        TM = topk * mme

        flat = rel_probs.reshape(B, Q * Cr)
        topk_val, topk_idx = jax.lax.top_k(flat, topk)       # (B, topk)
        total_pred_idx = topk_idx // Cr
        pred_rel_labels = topk_idx % Cr + 1

        pred_rel_prob_exp = jnp.repeat(topk_val, mme, axis=1)            # (B, TM)
        pred_rel_labels_exp = jnp.repeat(pred_rel_labels, mme, axis=1)
        total_pred_idx_exp = jnp.repeat(total_pred_idx, mme, axis=1)

        def extract(box_xyxy, dist):
            Cd = dist.shape[-1]
            idx_b = jnp.broadcast_to(total_pred_idx[:, :, None], (B, topk, 4))
            box_sel = jnp.take_along_axis(box_xyxy, idx_b, axis=1)       # (B, topk, 4)
            idx_d = jnp.broadcast_to(total_pred_idx[:, :, None], (B, topk, Cd))
            dist_sel = jnp.take_along_axis(dist, idx_d, axis=1)          # (B, topk, Cd)
            scores, labels = jax.lax.top_k(dist_sel, mme)                # (B, topk, mme)
            box_exp = jnp.repeat(box_sel, mme, axis=1)                   # (B, TM, 4)
            dist_exp = jnp.repeat(dist, mme, axis=1)                     # (B, Q*mme, Cd)
            return box_sel, box_exp, dist_exp, labels.reshape(B, -1), scores.reshape(B, -1)

        (obj_box_sel, obj_box_exp, obj_dist_exp,
         obj_label_flat, obj_score_flat) = extract(obj_box_xyxy, obj_dist)
        (sub_box_sel, sub_box_exp, sub_dist_exp,
         sub_label_flat, sub_score_flat) = extract(sub_box_xyxy, sub_dist)

        # triplet scores: tiny fused VPU work, plain XLA (pallas_call dropped)
        rel_trp_scores = pred_rel_prob_exp * sub_score_flat * obj_score_flat

        ent_score = jnp.concatenate([sub_score_flat, obj_score_flat], axis=1)   # (B, 2TM)
        ent_label = jnp.concatenate([sub_label_flat, obj_label_flat], axis=1)
        ent_box = jnp.concatenate([sub_box_exp, obj_box_exp], axis=1)           # (B, 2TM, 4)
        ent_dist = jnp.concatenate([sub_dist_exp, obj_dist_exp], axis=1)

        sub_ids = jnp.broadcast_to(jnp.arange(TM, dtype=jnp.float32), (B, TM))
        obj_ids = sub_ids + float(TM)
        triplet = jnp.stack([
            sub_ids, obj_ids,
            pred_rel_labels_exp.astype(jnp.float32),
            rel_trp_scores,
            pred_rel_prob_exp,
            total_pred_idx_exp.astype(jnp.float32)], axis=2)             # (B, TM, 6)

        # ---- Pallas: pairwise GIoU over UNIQUE boxes only (4x smaller matrix)
        unique_box = jnp.concatenate([sub_box_sel, obj_box_sel], axis=1)  # (B, 2*topk, 4)
        self_iou_pad, NU = generalized_box_iou_pallas(unique_box)         # (B, NP, NP) bf16

        # static ent-index -> unique-box-index remap (sub then obj halves)
        idx_map = np.concatenate([np.arange(TM, dtype=np.int64) // mme,
                                  topk + np.arange(TM, dtype=np.int64) // mme])

        # ---- single device -> host transfer after all batched device work
        host = jax.device_get(dict(
            rel_probs=rel_probs, triplet=triplet, self_iou=self_iou_pad,
            ent_score=ent_score, ent_label=ent_label,
            obj_box=obj_box_sel, sub_box=sub_box_sel,
            obj_label=obj_label_flat, sub_label=sub_label_flat,
            obj_score=obj_score_flat, sub_score=sub_score_flat,
            obj_dist=obj_dist, sub_dist=sub_dist))

        rel_proposals_predict, init_rel_proposals_predict = [], []
        for b, _ent_det in enumerate(det_res):
            trip_np = host['triplet'][b]
            # host-side crop of the padded bf16 matrix (free view) + f32 cast
            iou_u = np.asarray(host['self_iou'][b][:NU, :NU], dtype=np.float32)
            ent_label_np = host['ent_label'][b]
            ent_score_np = host['ent_score'][b]
            sub_lab_np = host['sub_label'][b]
            obj_lab_np = host['obj_label'][b]

            if post_proc_filtering:
                si = trip_np[:, self.SUB_IDX].astype(np.int64)
                oi = trip_np[:, self.OBJ_IDX].astype(np.int64)
                pair_iou = iou_u[idx_map[si], idx_map[oi]]
                keep = (pair_iou < 0.95) & (sub_lab_np != obj_lab_np)
                trip_f = trip_np[keep]
                o2 = np.argsort(-trip_f[:, self.REL_TRP_SCR], kind="stable")
                trip_f = trip_f[o2[:self.num_max_rel_pred]]
            else:
                trip_f = trip_np

            if post_proc_filtering and self.overlap_thres > 0:
                trip_sel = self._rel_prediction_filtering(trip_f, iou_u, idx_map,
                                                          ent_label_np, ent_score_np)
            else:
                trip_sel = trip_f

            o3 = np.argsort(-trip_sel[:, self.REL_TRP_SCR], kind="stable")
            trip_sel = trip_sel[o3[:max_proposal_pairs]]

            aux = dict(
                pred_rel_probs_b=host['rel_probs'][b],
                ent_score_dev=ent_score[b], ent_label_dev=ent_label[b],
                ent_box_dev=ent_box[b], ent_dist_dev=ent_dist[b],
                obj_box=host['obj_box'][b], sub_box=host['sub_box'][b],
                sub_label_flat=host['sub_label'][b], obj_label_flat=host['obj_label'][b],
                sub_score_flat=host['sub_score'][b], obj_score_flat=host['obj_score'][b],
                obj_dist=host['obj_dist'][b], sub_dist=host['sub_dist'][b])

            # reference semantics: "init" uses the post-filtered / truncated triplet
            init_rel_proposals_predict.append(self._res2dict(trip_f, aux))
            rel_proposals_predict.append(self._res2dict(trip_sel, aux))

        return rel_proposals_predict, init_rel_proposals_predict


# ----------------------------------------------------------------------------- main
if __name__ == "__main__":
    B, Q = 2, 8
    C_REL, C_ENT = 8, 16
    key = jax.random.PRNGKey(0)
    ks = jax.random.split(key, 8)

    def rand_boxes(k):
        kc, kw = jax.random.split(k)
        centers = jax.random.uniform(kc, (B, Q, 2), jnp.float32, 0.3, 0.7)
        wh = jax.random.uniform(kw, (B, Q, 2), jnp.float32, 0.1, 0.3)
        return jnp.concatenate([centers, wh], axis=-1)           # cxcywh in [0,1]

    outputs = {
        'pred_rel_logits': jax.random.normal(ks[0], (B, Q, C_REL), jnp.float32),
        'pred_rel_vec': jax.random.uniform(ks[1], (B, Q, 4), jnp.float32),
        'pred_rel_obj_logits': jax.random.normal(ks[2], (B, Q, C_ENT), jnp.float32),
        'pred_rel_sub_logits': jax.random.normal(ks[3], (B, Q, C_ENT), jnp.float32),
        'pred_rel_obj_box': rand_boxes(ks[4]),
        'pred_rel_sub_box': rand_boxes(ks[5]),
    }
    target_sizes = jnp.array([[480.0, 640.0], [512.0, 512.0]], jnp.float32)  # (h, w)
    det_res = list(range(B))  # only enumerated in the reference forward

    module = RelPostProcessSingleBranch(
        overlap_thres=0.8, num_ent_class=C_ENT, num_pred_edges=1,
        num_entities_pairing=2, num_max_rel_pred=100,
        focal_loss=True, use_entities_pred=True)

    rel_pred, init_pred = module.forward(outputs, det_res, target_sizes)

    for leaf in jax.tree_util.tree_leaves((rel_pred, init_pred)):
        if isinstance(leaf, jax.Array):
            jax.block_until_ready(leaf)
    print("KERNEL_OK")
</pallas_src>

<mosaic_0001>
module attributes {stable_mosaic.version = 11 : i64} {
  func.func @_sigmoid3_kernel(%arg0: i32, %arg1: memref<2x64xf32, #tpu.memory_space<vmem>>, %arg2: memref<2x128xf32, #tpu.memory_space<vmem>>, %arg3: memref<2x128xf32, #tpu.memory_space<vmem>>, %arg4: memref<2x64xf32, #tpu.memory_space<vmem>>, %arg5: memref<2x128xf32, #tpu.memory_space<vmem>>, %arg6: memref<2x128xf32, #tpu.memory_space<vmem>>) attributes {dimension_semantics = [#tpu.dimension_semantics<arbitrary>], iteration_bounds = array<i64: 1>, scalar_prefetch = 0 : i64, scratch_operands = 0 : i64, tpu.core_type = #tpu.core_type<tc>, window_params = [{pipeline_mode = #tpu.pipeline_mode<synchronous>, transform_indices = @transform_0, window_bounds = array<i64: 2, 64>}, {pipeline_mode = #tpu.pipeline_mode<synchronous>, transform_indices = @transform_1, window_bounds = array<i64: 2, 128>}, {pipeline_mode = #tpu.pipeline_mode<synchronous>, transform_indices = @transform_2, window_bounds = array<i64: 2, 128>}, {pipeline_mode = #tpu.pipeline_mode<synchronous>, transform_indices = @transform_3, window_bounds = array<i64: 2, 64>}, {pipeline_mode = #tpu.pipeline_mode<synchronous>, transform_indices = @transform_4, window_bounds = array<i64: 2, 128>}, {pipeline_mode = #tpu.pipeline_mode<synchronous>, transform_indices = @transform_5, window_bounds = array<i64: 2, 128>}]} {
    %c0 = arith.constant 0 : index
    %c0_0 = arith.constant 0 : index
    %0 = vector.load %arg1[%c0, %c0_0] : memref<2x64xf32, #tpu.memory_space<vmem>>, vector<2x64xf32>
    %1 = arith.negf %0 : vector<2x64xf32>
    %2 = math.exp %1 : vector<2x64xf32>
    %cst = arith.constant 1.000000e+00 : f32
    %3 = vector.broadcast %cst : f32 to vector<2x64xf32>
    %4 = arith.addf %3, %2 : vector<2x64xf32>
    %5 = arith.divf %3, %4 : vector<2x64xf32>
    %c0_1 = arith.constant 0 : index
    %c0_2 = arith.constant 0 : index
    %6 = vector.load %arg4[%c0_1, %c0_2] : memref<2x64xf32, #tpu.memory_space<vmem>>, vector<2x64xf32>
    tpu.vector_store %arg4[%c0_1, %c0_2], %5 {strides = array<i32>} : memref<2x64xf32, #tpu.memory_space<vmem>>, vector<2x64xf32>,
    %c0_3 = arith.constant 0 : index
    %c0_4 = arith.constant 0 : index
    %7 = vector.load %arg2[%c0_3, %c0_4] : memref<2x128xf32, #tpu.memory_space<vmem>>, vector<2x128xf32>
    %8 = arith.negf %7 : vector<2x128xf32>
    %9 = math.exp %8 : vector<2x128xf32>
    %cst_5 = arith.constant 1.000000e+00 : f32
    %10 = vector.broadcast %cst_5 : f32 to vector<2x128xf32>
    %11 = arith.addf %10, %9 : vector<2x128xf32>
    %12 = arith.divf %10, %11 : vector<2x128xf32>
    %c0_6 = arith.constant 0 : index
    %c0_7 = arith.constant 0 : index
    %13 = vector.load %arg5[%c0_6, %c0_7] : memref<2x128xf32, #tpu.memory_space<vmem>>, vector<2x128xf32>
    tpu.vector_store %arg5[%c0_6, %c0_7], %12 {strides = array<i32>} : memref<2x128xf32, #tpu.memory_space<vmem>>, vector<2x128xf32>,
    %c0_8 = arith.constant 0 : index
    %c0_9 = arith.constant 0 : index
    %14 = vector.load %arg3[%c0_8, %c0_9] : memref<2x128xf32, #tpu.memory_space<vmem>>, vector<2x128xf32>
    %15 = arith.negf %14 : vector<2x128xf32>
    %16 = math.exp %15 : vector<2x128xf32>
    %cst_10 = arith.constant 1.000000e+00 : f32
    %17 = vector.broadcast %cst_10 : f32 to vector<2x128xf32>
    %18 = arith.addf %17, %16 : vector<2x128xf32>
    %19 = arith.divf %17, %18 : vector<2x128xf32>
    %c0_11 = arith.constant 0 : index
    %c0_12 = arith.constant 0 : index
    %20 = vector.load %arg6[%c0_11, %c0_12] : memref<2x128xf32, #tpu.memory_space<vmem>>, vector<2x128xf32>
    tpu.vector_store %arg6[%c0_11, %c0_12], %19 {strides = array<i32>} : memref<2x128xf32, #tpu.memory_space<vmem>>, vector<2x128xf32>,
    return
  }
  func.func @transform_0(%arg0: i32) -> (i32, i32) {
    %c0_i32 = arith.constant 0 : i32
    %c0_i32_0 = arith.constant 0 : i32
    %c0_i32_1 = arith.constant 0 : i32
    return %c0_i32, %c0_i32_0 : i32, i32
  }
  func.func @transform_1(%arg0: i32) -> (i32, i32) {
    %c0_i32 = arith.constant 0 : i32
    %c0_i32_0 = arith.constant 0 : i32
    %c0_i32_1 = arith.constant 0 : i32
    return %c0_i32, %c0_i32_0 : i32, i32
  }
  func.func @transform_2(%arg0: i32) -> (i32, i32) {
    %c0_i32 = arith.constant 0 : i32
    %c0_i32_0 = arith.constant 0 : i32
    %c0_i32_1 = arith.constant 0 : i32
    return %c0_i32, %c0_i32_0 : i32, i32
  }
  func.func @transform_3(%arg0: i32) -> (i32, i32) {
    %c0_i32 = arith.constant 0 : i32
    %c0_i32_0 = arith.constant 0 : i32
    %c0_i32_1 = arith.constant 0 : i32
    return %c0_i32, %c0_i32_0 : i32, i32
  }
  func.func @transform_4(%arg0: i32) -> (i32, i32) {
    %c0_i32 = arith.constant 0 : i32
    %c0_i32_0 = arith.constant 0 : i32
    %c0_i32_1 = arith.constant 0 : i32
    return %c0_i32, %c0_i32_0 : i32, i32
  }
  func.func @transform_5(%arg0: i32) -> (i32, i32) {
    %c0_i32 = arith.constant 0 : i32
    %c0_i32_0 = arith.constant 0 : i32
    %c0_i32_1 = arith.constant 0 : i32
    return %c0_i32, %c0_i32_0 : i32, i32
  }
}

</mosaic_0001>

<llo_original>
// kernel: tpu_custom_call.1
$region0: #{tpu_custom_call.1}
  #allocation0 [shape = 'u32[]', space=smem, size = 0x4, offset = 0x4, fixed_abs, tag = 'smem constant byte address 0x4 - core index']
  #allocation1 [shape = 'u32[144,128]{1,0:T(1,128)}', space=vmem, size = 0x12000, scoped, tag = 'internal scratch']
  %s0 = inlined_call_operand.hbm [shape: f32[2,64], index: 0, kind: input, shape index: {}]
  %s1 = inlined_call_operand.vmem [shape: f32[2,128], index: 1, kind: input, shape index: {}]
  %s2 = inlined_call_operand.vmem [shape: f32[2,128], index: 2, kind: input, shape index: {}]
  %s3 = inlined_call_operand.hbm [shape: f32[2,64], index: 3, kind: output, shape index: {0}]
  %s4 = inlined_call_operand.hbm [shape: f32[2,128], index: 4, kind: output, shape index: {1}]
  %s5 = inlined_call_operand.hbm [shape: f32[2,128], index: 5, kind: output, shape index: {2}]
  %6 = xla_tuple %s3, %s4, %s5
  %s7 = sld [smem:[#allocation0]]
  $region42: #{tpu_custom_call.1} parent=0
    _
  %s9 = ssub.s32 1, %s7
  %s10 = scalar_select 0, %s9, %s7
  $region1: #{tpu_custom_call.1} parent=0
    #allocation2 [shape = 'u8[1024]{0}', space=vmem, size = 0x400, scoped, tag = 'input window, operand 0, single buffered']
    #allocation3 [shape = 's32[1]{0}', space=sflag, size = 0x4, scoped, tag = 'scoped memory for tpu_custom_call.1']
    #allocation4 [shape = 's32[1]{0}', space=sflag, size = 0x4, scoped, tag = 'scoped memory for tpu_custom_call.1']
    #allocation5 [shape = 'u8[1024]{0}', space=vmem, size = 0x400, scoped, tag = 'output window, operand 0, single buffered']
    #allocation6 [shape = 'u8[1024]{0}', space=vmem, size = 0x400, scoped, tag = 'output window, operand 1, single buffered']
    #allocation7 [shape = 's32[1]{0}', space=sflag, size = 0x4, scoped, tag = 'scoped memory for tpu_custom_call.1']
    #allocation8 [shape = 'u8[1024]{0}', space=vmem, size = 0x400, scoped, tag = 'output window, operand 2, single buffered']
    %11 = vsyncpa [#allocation3], 0
    %12 = vsyncpa [#allocation4], 0
    %13 = vsyncpa [#allocation7], 0
    // Predicated region
    $region2: #{tpu_custom_call.1} parent=1 // pred_check
      _
    $region3: #{tpu_custom_call.1} parent=1 // pred_check_branch
      %15 = sbr.rel (0) target = $region5
    $region4: #{tpu_custom_call.1} parent=1 // pred_region
      %s17 = ssub.s32 32, 32
      %18 = vsyncadd [#allocation3], %s17
      %s20 = sshll.u32 [#allocation2], 4
      %s21 = int_to_ptr.vmem [resolvable:$true] %s20
      %23 = dma.hbm_to_vmem [thread:$0]  %s0, 32, %s21, [#allocation3]
    $region5: #{tpu_custom_call.1} parent=1 // pred_fallthru
      _
    // Predicated region
    $region6: #{tpu_custom_call.1} parent=1 // pred_check
      _
    $region7: #{tpu_custom_call.1} parent=1 // pred_check_branch
      %25 = sbr.rel (0) target = $region9
    $region8: #{tpu_custom_call.1} parent=1 // pred_region
      _
    $region9: #{tpu_custom_call.1} parent=1 // pred_fallthru
      _
    // Predicated region
    $region10: #{tpu_custom_call.1} parent=1 // pred_check
      _
    $region11: #{tpu_custom_call.1} parent=1 // pred_check_branch
      %27 = sbr.rel (0) target = $region13
    $region12: #{tpu_custom_call.1} parent=1 // pred_region
      _
    $region13: #{tpu_custom_call.1} parent=1 // pred_fallthru
      _
    // Predicated region
    $region14: #{tpu_custom_call.1} parent=1 // pred_check
      _
    $region15: #{tpu_custom_call.1} parent=1 // pred_check_branch
      %29 = sbr.rel (0) target = $region17
    $region16: #{tpu_custom_call.1} parent=1 // pred_region
      %30 = dma.done [#allocation3], 32
    $region17: #{tpu_custom_call.1} parent=1 // pred_fallthru
      _
    %v31 = vld [vmem:[#allocation2] sm:$0x3]
    %v32 = vxor.u32 %v31, 2147483648
    %v33 = vmul.f32 %v32, 1.442695
    %v34 = vpow.pop %v33
    %v35 = vadd.f32 %v34, 1.0
    %v36 = vrcp.pop %v35
    %v37 = vmul.f32 1.0, %v36
    %vm38 = vcmask 517120
    %39 = vst.msk [vmem:[#allocation5] sm:$0x3] %vm38, %v37
    %v40 = vld [vmem:[%s1] sm:$0x3]
    %v41 = vxor.u32 %v40, 2147483648
    %v42 = vmul.f32 %v41, 1.442695
    %v43 = vpow.pop %v42
    %v44 = vadd.f32 %v43, 1.0
    %v45 = vrcp.pop %v44
    %v46 = vmul.f32 1.0, %v45
    %47 = vst [vmem:[#allocation6] sm:$0x3] %v46
    %v48 = vld [vmem:[%s2] sm:$0x3]
    %v49 = vxor.u32 %v48, 2147483648
    %v50 = vmul.f32 %v49, 1.442695
    %v51 = vpow.pop %v50
    %v52 = vadd.f32 %v51, 1.0
    %v53 = vrcp.pop %v52
    %v54 = vmul.f32 1.0, %v53
    %55 = vst [vmem:[#allocation8] sm:$0x3] %v54
    // Predicated region
    $region18: #{tpu_custom_call.1} parent=1 // pred_check
      _
    $region19: #{tpu_custom_call.1} parent=1 // pred_check_branch
      %57 = sbr.rel (0) target = $region21
    $region20: #{tpu_custom_call.1} parent=1 // pred_region
      %s59 = ssub.s32 32, 32
      %60 = vsyncadd [#allocation4], %s59
      %s62 = sshll.u32 [#allocation5], 4
      %s63 = int_to_ptr.vmem [resolvable:$true] %s62
      %65 = dma.vmem_to_hbm [thread:$0]  %s63, 32, %s3, [#allocation4]
    $region21: #{tpu_custom_call.1} parent=1 // pred_fallthru
      _
    // Predicated region
    $region22: #{tpu_custom_call.1} parent=1 // pred_check
      _
    $region23: #{tpu_custom_call.1} parent=1 // pred_check_branch
      %67 = sbr.rel (0) target = $region25
    $region24: #{tpu_custom_call.1} parent=1 // pred_region
      %s69 = ssub.s32 32, 32
      %70 = vsyncadd [#allocation7], %s69
      %s72 = sshll.u32 [#allocation6], 4
      %s73 = int_to_ptr.vmem [resolvable:$true] %s72
      %75 = dma.vmem_to_hbm [thread:$0]  %s73, 32, %s4, [#allocation7]
    $region25: #{tpu_custom_call.1} parent=1 // pred_fallthru
      _
    // Predicated region
    $region26: #{tpu_custom_call.1} parent=1 // pred_check
      _
    $region27: #{tpu_custom_call.1} parent=1 // pred_check_branch
      %77 = sbr.rel (0) target = $region29
    $region28: #{tpu_custom_call.1} parent=1 // pred_region
      %s79 = ssub.s32 32, 32
      %80 = vsyncadd [#allocation7], %s79
      %s82 = sshll.u32 [#allocation8], 4
      %s83 = int_to_ptr.vmem [resolvable:$true] %s82
      %85 = dma.vmem_to_hbm [thread:$0]  %s83, 32, %s5, [#allocation7]
    $region29: #{tpu_custom_call.1} parent=1 // pred_fallthru
      _
    // Predicated region
    $region30: #{tpu_custom_call.1} parent=1 // pred_check
      _
    $region31: #{tpu_custom_call.1} parent=1 // pred_check_branch
      %87 = sbr.rel (0) target = $region33
    $region32: #{tpu_custom_call.1} parent=1 // pred_region
      %88 = dma.done [#allocation4], 32
    $region33: #{tpu_custom_call.1} parent=1 // pred_fallthru
      _
    // Predicated region
    $region34: #{tpu_custom_call.1} parent=1 // pred_check
      _
    $region35: #{tpu_custom_call.1} parent=1 // pred_check_branch
      %90 = sbr.rel (0) target = $region37
    $region36: #{tpu_custom_call.1} parent=1 // pred_region
      %91 = dma.done [#allocation7], 32
    $region37: #{tpu_custom_call.1} parent=1 // pred_fallthru
      _
    // Predicated region
    $region38: #{tpu_custom_call.1} parent=1 // pred_check
      _
    $region39: #{tpu_custom_call.1} parent=1 // pred_check_branch
      %93 = sbr.rel (0) target = $region41
    $region40: #{tpu_custom_call.1} parent=1 // pred_region
      %94 = dma.done [#allocation7], 32
    $region41: #{tpu_custom_call.1} parent=1 // pred_fallthru
      _
    %95 = vsyncpa [#allocation3], 1
    %96 = vsyncpa [#allocation4], 1
    %97 = vsyncpa [#allocation7], 1

</llo_original>
